<compile_context>
chip_gen: v6e
topology: v6e:2x2x1
jax: 0.10.0
libtpu: 0.0.40
codegen_flags: <defaults>
</compile_context>

<pallas_src>
import numpy as np
import jax
import jax.numpy as jnp
from jax.experimental import pallas as pl
from jax.experimental.pallas import tpu as pltpu  # noqa: F401  (TPU backend)

# ----------------------------- hyper params ---------------------------------
NB = 2            # batch
NL = 16           # sequence length (entity index range)
H = 128           # encoder hidden size (lane-dense)
D_MID = 128       # MLP hidden (config.mlp)
D = 128           # relation / projected entity dim (config.distance_rel.n_dims)
N_REL = NL + 1    # distance-relation vocabulary (config.distance_rel.n_embeddings)
N_REL_PAD = 32    # padded to a sublane multiple; padding rows are all-zero
MARGIN = 1.0      # config.coref_mrl.loss_margin
LAMBDA_W = 1.0    # config.coref_mrl.lambda_w
SUBLANE = 8       # triple-axis padding granularity


# ----------------------------- Pallas kernel --------------------------------
def _coref_mrl_kernel(h_ref, idx_ref, relid_ref, mask_ref,
                      w1_ref, b1_ref, w2_ref, b2_ref, rel_emb_ref, loss_ref):
    """Hot path, single invocation:
       1. project ALL entity states once (M = NB*NL rows) through the MLP,
       2. gather projected rows for (antecedent, coref, negative) with ONE
          fused one-hot matmul (one-hot built on-chip via iota compare),
       3. in-kernel distance-relation embedding lookup (one-hot matmul),
       4. TransE L1 scores + masked margin hinge, reduced to the final loss."""
    # (1) shared MLP projection — each source row projected exactly once.
    z = jnp.dot(h_ref[...], w1_ref[...],
                preferred_element_type=jnp.float32) + b1_ref[...]
    z = jnp.maximum(z, 0.0)
    p = jnp.dot(z, w2_ref[...],
                preferred_element_type=jnp.float32) + b2_ref[...]          # (M, D)

    # (2) fused gather of ant/cor/neg projected rows: one-hot built on-chip,
    #     then a single (3T, M) @ (M, D) MXU stream.
    m = h_ref.shape[0]
    t3 = idx_ref.shape[0]
    g = (jax.lax.broadcasted_iota(jnp.int32, (t3, m), 1)
         == idx_ref[...]).astype(jnp.float32)                             # (3T, M)
    sel = jnp.dot(g, p, preferred_element_type=jnp.float32)               # (3T, D)
    t = relid_ref.shape[0]
    p_ant = sel[0 * t:1 * t]
    p_cor = sel[1 * t:2 * t]
    p_neg = sel[2 * t:3 * t]

    # (3) distance-relation embedding lookup (padding_idx row is all zeros).
    n_rel = rel_emb_ref.shape[0]
    r1h = (jax.lax.broadcasted_iota(jnp.int32, (t, n_rel), 1)
           == relid_ref[...]).astype(jnp.float32)                         # (T, NR)
    rel = jnp.dot(r1h, rel_emb_ref[...],
                  preferred_element_type=jnp.float32)                     # (T, D)

    # (4) TransE-style score (higher is better) + margin ranking hinge,
    #     masked mean over VALID triples, lambda_w — all on-chip.
    d = p_ant + rel
    pos = -jnp.sum(jnp.abs(d - p_cor), axis=-1, keepdims=True)            # (T, 1)
    neg = -jnp.sum(jnp.abs(d - p_neg), axis=-1, keepdims=True)            # (T, 1)
    hinge = jnp.maximum(MARGIN + neg - pos, 0.0) * mask_ref[...]          # pads out
    total = jnp.sum(hinge, keepdims=True)                                 # (1, 1)
    count = jnp.maximum(jnp.sum(mask_ref[...], keepdims=True), 1.0)       # (1, 1)
    loss_ref[...] = LAMBDA_W * total / count


def coref_mrl_loss_pallas(h_flat, idx, rel_ids, mask, w1, b1, w2, b2, rel_emb):
    """Single pallas_call over whole (small) operands; no grid, no pipeline
    overhead.  For large triple counts one would tile the (idx, rel_ids, mask)
    triple axis with T_TILE >= 512 and 'parallel' per-tile partial sums."""
    m, hdim = h_flat.shape
    t3 = idx.shape[0]
    t = rel_ids.shape[0]
    dmid = w1.shape[1]
    d = w2.shape[1]
    nrel = rel_emb.shape[0]
    flops = (2 * m * hdim * dmid + 2 * m * dmid * d      # shared MLP
             + 2 * t3 * m * d                            # one-hot gather matmul
             + 2 * t * nrel * d                           # relation embedding matmul
             + 12 * t * d)                               # scores + hinge
    bytes_accessed = 4 * (m * hdim + t3 + 2 * t
                          + hdim * dmid + dmid + dmid * d + d
                          + nrel * d + 1)

    loss = pl.pallas_call(
        _coref_mrl_kernel,
        out_shape=jax.ShapeDtypeStruct((1, 1), jnp.float32),
        cost_estimate=pl.CostEstimate(flops=flops, transcendentals=0,
                                      bytes_accessed=bytes_accessed),
    )(h_flat, idx, rel_ids, mask, w1, b1, w2, b2, rel_emb)
    return loss[0, 0]


# ----------------------------- references (pure JAX) -------------------------
def _project(h, w1, b1, w2, b2):
    return jnp.maximum(h @ w1 + b1, 0.0) @ w2 + b2


def coref_mrl_loss_ref_onehot(batch, w1, b1, w2, b2, rel_emb):
    """Reference mirroring the kernel's one-hot-matmul formulation."""
    p = _project(batch['h_flat'], w1, b1, w2, b2)
    g = jax.nn.one_hot(batch['idx'][:, 0], batch['h_flat'].shape[0],
                       dtype=jnp.float32)
    sel = g @ p
    t = batch['rel_idx'].shape[0]
    pa, pc, pn = sel[:t], sel[t:2 * t], sel[2 * t:]
    r1h = jax.nn.one_hot(batch['rel_idx'][:, 0], rel_emb.shape[0],
                         dtype=jnp.float32)
    rel = r1h @ rel_emb
    pos = -jnp.sum(jnp.abs(pa + rel - pc), axis=-1, keepdims=True)
    neg = -jnp.sum(jnp.abs(pa + rel - pn), axis=-1, keepdims=True)
    hinge = jnp.maximum(MARGIN + neg - pos, 0.0) * batch['mask']
    return LAMBDA_W * jnp.sum(hinge) / batch['n_valid']


def coref_mrl_loss_ref_indexed(batch, w1, b1, w2, b2, rel_emb):
    """Semantic reference: exact row-index gather (what the module computes)."""
    p = _project(batch['h_flat'], w1, b1, w2, b2)
    pa = p[batch['ant_idx']]
    pc = p[batch['cor_idx']]
    pn = p[batch['neg_idx']]
    rel = rel_emb[batch['rel_idx'][:, 0]]
    pos = -jnp.sum(jnp.abs(pa + rel - pc), axis=-1)
    neg = -jnp.sum(jnp.abs(pa + rel - pn), axis=-1)
    hinge = jnp.maximum(MARGIN + neg - pos, 0.0) * batch['mask'][:, 0]
    return LAMBDA_W * jnp.sum(hinge) / batch['n_valid']


# ----------------------------- CorefNet wrapper ------------------------------
class CorefNetPallas:
    """JAX/Pallas re-implementation of CorefNet.forward (minimal config)."""

    def __init__(self, key):
        k1, k2, k3, k4, k5 = jax.random.split(key, 5)
        # ffn (config.mlp) applied to indexed entity states
        self.w1 = jax.random.normal(k1, (H, D_MID), jnp.float32) * 0.1
        self.b1 = jax.random.normal(k2, (1, D_MID), jnp.float32) * 0.01
        self.w2 = jax.random.normal(k3, (D_MID, D), jnp.float32) * 0.1
        self.b2 = jax.random.normal(k4, (1, D), jnp.float32) * 0.01
        # EmbeddingRepresentationModel (distance relations), padding_idx=0;
        # zero-padded to N_REL_PAD rows for clean sublane tiling in-kernel.
        rel_emb = jax.random.normal(k5, (N_REL, D), jnp.float32) * 0.1
        rel_emb = rel_emb.at[0].set(0.0)
        self.rel_emb = jnp.concatenate(
            [rel_emb, jnp.zeros((N_REL_PAD - N_REL, D), jnp.float32)], axis=0)

    @staticmethod
    def get_triples(batch_mentions):
        """Mirrors CorefNet.get_triples: per-mention unique corefs,
        relation = |coref - antecedent|.  Returns per-batch (n, 3) arrays."""
        batch_triples = []
        for mentions in batch_mentions:
            mentions = sorted(mentions, key=lambda x: x[0])
            rows = []
            for antecedent, corefs in mentions:
                corefs = np.array(sorted(set(int(c) for c in corefs)),
                                  dtype=np.int32)
                relations = np.abs(corefs - antecedent).astype(np.int32)
                ants = np.full_like(corefs, antecedent)
                rows.append(np.stack([ants, relations, corefs], axis=1))
            batch_triples.append(np.concatenate(rows, axis=0))
        return batch_triples

    def build_triple_batch(self, h_x, batch_mentions, neg_key):
        """Host-side glue (ragged mention lists -> flat padded triple batch),
        as in the original (get_triples is a Python loop there as well)."""
        nb, nl, hdim = h_x.shape
        batch_triples = self.get_triples(batch_mentions)

        ant, rel_i, cor, bat = [], [], [], []
        for b, trips in enumerate(batch_triples):
            ant.append(trips[:, 0] + nl * b)      # flattened indices (offsets)
            rel_i.append(trips[:, 1])
            cor.append(trips[:, 2] + nl * b)
            bat.append(np.full(trips.shape[0], b, np.int32))
        ant = np.concatenate(ant).astype(np.int32)
        rel_i = np.concatenate(rel_i).astype(np.int32)
        cor = np.concatenate(cor).astype(np.int32)
        bat = np.concatenate(bat).astype(np.int32)

        n_valid = int(ant.shape[0])
        t_pad = ((n_valid + SUBLANE - 1) // SUBLANE) * SUBLANE

        def pad(x, value=0):
            extra = t_pad - x.shape[0]
            if extra == 0:
                return x
            return np.concatenate([x, np.full(extra, value, x.dtype)])

        ant_p = jnp.asarray(pad(ant))
        rel_p = jnp.asarray(pad(rel_i))      # pad with 0 -> rel_emb padding row
        cor_p = jnp.asarray(pad(cor))
        bat_p = jnp.asarray(pad(bat))
        mask = np.zeros((t_pad, 1), np.float32)
        mask[:n_valid] = 1.0                 # padded triples masked out of loss

        # Deterministic in-batch negative sampling of corrupted corefs;
        # shift in [1, nl-1] guarantees the negative differs from the coref.
        # TODO(synk): exact filtering semantics of the original NegativeSampler
        # are undisclosed.
        shift = jax.random.randint(neg_key, (t_pad,), 1, nl, dtype=jnp.int32)
        cor_local = cor_p - bat_p * nl
        neg_p = (cor_local + shift) % nl + bat_p * nl

        idx = jnp.concatenate([ant_p, cor_p, neg_p]).astype(jnp.int32)
        idx = idx.reshape(-1, 1)                                  # (3*T_pad, 1)
        rel_idx = rel_p.astype(jnp.int32).reshape(-1, 1)          # (T_pad, 1)

        h_flat = h_x.reshape(nb * nl, hdim)
        return dict(h_flat=h_flat, idx=idx, rel_idx=rel_idx,
                    mask=jnp.asarray(mask),
                    ant_idx=ant_p, cor_idx=cor_p, neg_idx=neg_p,
                    n_valid=n_valid)

    def forward(self, h_x, batch_mentions, neg_key):
        batch = self.build_triple_batch(h_x, batch_mentions, neg_key)
        loss = coref_mrl_loss_pallas(batch['h_flat'], batch['idx'],
                                     batch['rel_idx'], batch['mask'],
                                     self.w1, self.b1, self.w2, self.b2,
                                     self.rel_emb)
        # TODO(synk): ctxt_mrl branch, aggregate_entity GNN, attributed
        # co-embeddings and contextual weight model are config-off here and
        # depend on undisclosed submodules; not implemented.
        return loss, h_x


# --------------------------------- main --------------------------------------
if __name__ == "__main__":
    key = jax.random.PRNGKey(0)
    k_hx, k_params, k_neg = jax.random.split(key, 3)

    h_x = jax.random.normal(k_hx, (NB, NL, H), jnp.float32)

    # Deterministic synthetic mention structure: (antecedent, [corefs]).
    # 8 + 5 = 13 unique triples -> padded to 16 (exercises the validity mask).
    batch_mentions = [
        [(1, [3, 5, 7]), (4, [8, 10]), (9, [12, 13, 15])],
        [(0, [2, 4]), (5, [7, 9, 11])],
    ]

    net = CorefNetPallas(k_params)
    loss, h_out = net.forward(h_x, batch_mentions, k_neg)
    loss = jax.block_until_ready(loss)
    h_out = jax.block_until_ready(h_out)

    # Correctness checks (test-only; not part of the production forward path).
    batch = net.build_triple_batch(h_x, batch_mentions, k_neg)
    loss_ref = coref_mrl_loss_ref_onehot(batch, net.w1, net.b1, net.w2, net.b2,
                                         net.rel_emb)
    loss_ref_ix = coref_mrl_loss_ref_indexed(batch, net.w1, net.b1,
                                             net.w2, net.b2, net.rel_emb)
    np.testing.assert_allclose(np.asarray(loss), np.asarray(loss_ref),
                               rtol=1e-3, atol=1e-3)
    np.testing.assert_allclose(np.asarray(loss), np.asarray(loss_ref_ix),
                               rtol=5e-2, atol=5e-2)
    assert h_out.shape == (NB, NL, H)
    print("KERNEL_OK")
</pallas_src>

<mosaic_0001>
module attributes {stable_mosaic.version = 11 : i64} {
  func.func @_coref_mrl_kernel(%arg0: memref<32x128xf32, #tpu.memory_space<vmem>>, %arg1: memref<48x1xi32, #tpu.memory_space<vmem>>, %arg2: memref<16x1xi32, #tpu.memory_space<vmem>>, %arg3: memref<16x1xf32, #tpu.memory_space<vmem>>, %arg4: memref<128x128xf32, #tpu.memory_space<vmem>>, %arg5: memref<1x128xf32, #tpu.memory_space<vmem>>, %arg6: memref<128x128xf32, #tpu.memory_space<vmem>>, %arg7: memref<1x128xf32, #tpu.memory_space<vmem>>, %arg8: memref<32x128xf32, #tpu.memory_space<vmem>>, %arg9: memref<1x1xf32, #tpu.memory_space<vmem>>) attributes {dimension_semantics = [], scalar_prefetch = 0 : i64, scratch_operands = 0 : i64, tpu.core_type = #tpu.core_type<tc>} {
    %c0 = arith.constant 0 : index
    %c0_0 = arith.constant 0 : index
    %0 = vector.load %arg0[%c0, %c0_0] : memref<32x128xf32, #tpu.memory_space<vmem>>, vector<32x128xf32>
    %c0_1 = arith.constant 0 : index
    %c0_2 = arith.constant 0 : index
    %1 = vector.load %arg4[%c0_1, %c0_2] : memref<128x128xf32, #tpu.memory_space<vmem>>, vector<128x128xf32>
    %cst = arith.constant dense<0.000000e+00> : vector<32x128xf32>
    %2 = tpu.matmul %0, %1, %cst {dimension_numbers = #tpu.dot_dimension_numbers<[1], [0], [0], [1], [0, 0, 1, 1], [], []>} : vector<32x128xf32>, vector<128x128xf32>, vector<32x128xf32> -> vector<32x128xf32>
    %c0_3 = arith.constant 0 : index
    %c0_4 = arith.constant 0 : index
    %3 = vector.load %arg5[%c0_3, %c0_4] : memref<1x128xf32, #tpu.memory_space<vmem>>, vector<1x128xf32>
    %4 = vector.broadcast %3 : vector<1x128xf32> to vector<32x128xf32>
    %5 = arith.addf %2, %4 : vector<32x128xf32>
    %cst_5 = arith.constant 0.000000e+00 : f32
    %6 = vector.broadcast %cst_5 : f32 to vector<32x128xf32>
    %7 = arith.maximumf %5, %6 : vector<32x128xf32>
    %c0_6 = arith.constant 0 : index
    %c0_7 = arith.constant 0 : index
    %8 = vector.load %arg6[%c0_6, %c0_7] : memref<128x128xf32, #tpu.memory_space<vmem>>, vector<128x128xf32>
    %cst_8 = arith.constant dense<0.000000e+00> : vector<32x128xf32>
    %9 = tpu.matmul %7, %8, %cst_8 {dimension_numbers = #tpu.dot_dimension_numbers<[1], [0], [0], [1], [0, 0, 1, 1], [], []>} : vector<32x128xf32>, vector<128x128xf32>, vector<32x128xf32> -> vector<32x128xf32>
    %c0_9 = arith.constant 0 : index
    %c0_10 = arith.constant 0 : index
    %10 = vector.load %arg7[%c0_9, %c0_10] : memref<1x128xf32, #tpu.memory_space<vmem>>, vector<1x128xf32>
    %11 = vector.broadcast %10 : vector<1x128xf32> to vector<32x128xf32>
    %12 = arith.addf %9, %11 : vector<32x128xf32>
    %13 = tpu.iota {dimensions = array<i32: 1>} : vector<48x32xi32>
    %c0_11 = arith.constant 0 : index
    %c0_12 = arith.constant 0 : index
    %14 = vector.load %arg1[%c0_11, %c0_12] : memref<48x1xi32, #tpu.memory_space<vmem>>, vector<48x1xi32>
    %15 = vector.broadcast %14 : vector<48x1xi32> to vector<48x32xi32>
    %16 = arith.cmpi eq, %13, %15 : vector<48x32xi32>
    %17 = arith.extui %16 : vector<48x32xi1> to vector<48x32xi32>
    %18 = arith.sitofp %17 : vector<48x32xi32> to vector<48x32xf32>
    %cst_13 = arith.constant dense<0.000000e+00> : vector<48x128xf32>
    %19 = tpu.matmul %18, %12, %cst_13 {dimension_numbers = #tpu.dot_dimension_numbers<[1], [0], [0], [1], [0, 0, 1, 1], [], []>} : vector<48x32xf32>, vector<32x128xf32>, vector<48x128xf32> -> vector<48x128xf32>
    %20 = vector.extract_strided_slice %19 {offsets = [0, 0], sizes = [16, 128], strides = [1, 1]} : vector<48x128xf32> to vector<16x128xf32>
    %21 = vector.extract_strided_slice %19 {offsets = [16, 0], sizes = [16, 128], strides = [1, 1]} : vector<48x128xf32> to vector<16x128xf32>
    %22 = vector.extract_strided_slice %19 {offsets = [32, 0], sizes = [16, 128], strides = [1, 1]} : vector<48x128xf32> to vector<16x128xf32>
    %23 = tpu.iota {dimensions = array<i32: 1>} : vector<16x32xi32>
    %c0_14 = arith.constant 0 : index
    %c0_15 = arith.constant 0 : index
    %24 = vector.load %arg2[%c0_14, %c0_15] : memref<16x1xi32, #tpu.memory_space<vmem>>, vector<16x1xi32>
    %25 = vector.broadcast %24 : vector<16x1xi32> to vector<16x32xi32>
    %26 = arith.cmpi eq, %23, %25 : vector<16x32xi32>
    %27 = arith.extui %26 : vector<16x32xi1> to vector<16x32xi32>
    %28 = arith.sitofp %27 : vector<16x32xi32> to vector<16x32xf32>
    %c0_16 = arith.constant 0 : index
    %c0_17 = arith.constant 0 : index
    %29 = vector.load %arg8[%c0_16, %c0_17] : memref<32x128xf32, #tpu.memory_space<vmem>>, vector<32x128xf32>
    %cst_18 = arith.constant dense<0.000000e+00> : vector<16x128xf32>
    %30 = tpu.matmul %28, %29, %cst_18 {dimension_numbers = #tpu.dot_dimension_numbers<[1], [0], [0], [1], [0, 0, 1, 1], [], []>} : vector<16x32xf32>, vector<32x128xf32>, vector<16x128xf32> -> vector<16x128xf32>
    %31 = arith.addf %20, %30 : vector<16x128xf32>
    %32 = arith.subf %31, %21 : vector<16x128xf32>
    %33 = math.absf %32 : vector<16x128xf32>
    %cst_19 = arith.constant dense<0.000000e+00> : vector<16xf32>
    %34 = vector.multi_reduction <add>, %33, %cst_19 [1] : vector<16x128xf32> to vector<16xf32>
    %35 = vector.shape_cast %34 : vector<16xf32> to vector<16x1xf32>
    %cst_20 = arith.constant 0.000000e+00 : f32
    %36 = vector.broadcast %cst_20 : f32 to vector<16x1xf32>
    %37 = arith.subf %36, %35 : vector<16x1xf32>
    %38 = arith.subf %31, %22 : vector<16x128xf32>
    %39 = math.absf %38 : vector<16x128xf32>
    %cst_21 = arith.constant dense<0.000000e+00> : vector<16xf32>
    %40 = vector.multi_reduction <add>, %39, %cst_21 [1] : vector<16x128xf32> to vector<16xf32>
    %41 = vector.shape_cast %40 : vector<16xf32> to vector<16x1xf32>
    %cst_22 = arith.constant 0.000000e+00 : f32
    %42 = vector.broadcast %cst_22 : f32 to vector<16x1xf32>
    %43 = arith.subf %42, %41 : vector<16x1xf32>
    %cst_23 = arith.constant 1.000000e+00 : f32
    %44 = vector.broadcast %cst_23 : f32 to vector<16x1xf32>
    %45 = arith.addf %44, %43 : vector<16x1xf32>
    %46 = arith.subf %45, %37 : vector<16x1xf32>
    %cst_24 = arith.constant 0.000000e+00 : f32
    %47 = vector.broadcast %cst_24 : f32 to vector<16x1xf32>
    %48 = arith.maximumf %46, %47 : vector<16x1xf32>
    %c0_25 = arith.constant 0 : index
    %c0_26 = arith.constant 0 : index
    %49 = vector.load %arg3[%c0_25, %c0_26] : memref<16x1xf32, #tpu.memory_space<vmem>>, vector<16x1xf32>
    %50 = arith.mulf %48, %49 : vector<16x1xf32>
    %51 = vector.shape_cast %50 : vector<16x1xf32> to vector<1x16x1xf32>
    %cst_27 = arith.constant dense<0.000000e+00> : vector<1xf32>
    %52 = vector.multi_reduction <add>, %51, %cst_27 [1, 2] : vector<1x16x1xf32> to vector<1xf32>
    %53 = vector.shape_cast %52 : vector<1xf32> to vector<1x1x1xf32>
    %54 = vector.extract %53[0, 0, 0] : f32 from vector<1x1x1xf32>
    %55 = vector.broadcast %54 : f32 to vector<1x1xf32>
    %c0_28 = arith.constant 0 : index
    %c0_29 = arith.constant 0 : index
    %56 = vector.load %arg3[%c0_28, %c0_29] : memref<16x1xf32, #tpu.memory_space<vmem>>, vector<16x1xf32>
    %57 = vector.shape_cast %56 : vector<16x1xf32> to vector<1x16x1xf32>
    %cst_30 = arith.constant dense<0.000000e+00> : vector<1xf32>
    %58 = vector.multi_reduction <add>, %57, %cst_30 [1, 2] : vector<1x16x1xf32> to vector<1xf32>
    %59 = vector.shape_cast %58 : vector<1xf32> to vector<1x1x1xf32>
    %60 = vector.extract %59[0, 0, 0] : f32 from vector<1x1x1xf32>
    %61 = vector.broadcast %60 : f32 to vector<1x1xf32>
    %cst_31 = arith.constant 1.000000e+00 : f32
    %62 = vector.broadcast %cst_31 : f32 to vector<1x1xf32>
    %63 = arith.maximumf %61, %62 : vector<1x1xf32>
    %cst_32 = arith.constant 1.000000e+00 : f32
    %64 = vector.broadcast %cst_32 : f32 to vector<1x1xf32>
    %65 = arith.mulf %64, %55 : vector<1x1xf32>
    %66 = arith.divf %65, %63 : vector<1x1xf32>
    %c0_33 = arith.constant 0 : index
    %c0_34 = arith.constant 0 : index
    %67 = vector.load %arg9[%c0_33, %c0_34] : memref<1x1xf32, #tpu.memory_space<vmem>>, vector<1x1xf32>
    tpu.vector_store %arg9[%c0_33, %c0_34], %66 {strides = array<i32>} : memref<1x1xf32, #tpu.memory_space<vmem>>, vector<1x1xf32>,
    return
  }
}

</mosaic_0001>

<llo_original>
// kernel: tpu_custom_call.1
$region0: #{tpu_custom_call.1}
  #allocation0 [shape = 'u32[]', space=smem, size = 0x4, offset = 0x4, fixed_abs, tag = 'smem constant byte address 0x4 - core index']
  #allocation1 [shape = 'u32[144,128]{1,0:T(1,128)}', space=vmem, size = 0x12000, scoped, tag = 'internal scratch']
  %s0 = inlined_call_operand.vmem [shape: f32[32,128], index: 0, kind: input, shape index: {}]
  %s1 = inlined_call_operand.vmem [shape: s32[48,1], index: 1, kind: input, shape index: {}]
  %s2 = inlined_call_operand.vmem [shape: s32[16,1], index: 2, kind: input, shape index: {}]
  %s3 = inlined_call_operand.vmem [shape: f32[16,1], index: 3, kind: input, shape index: {}]
  %s4 = inlined_call_operand.hbm [shape: f32[128,128], index: 4, kind: input, shape index: {}]
  %s5 = inlined_call_operand.vmem [shape: f32[1,128], index: 5, kind: input, shape index: {}]
  %s6 = inlined_call_operand.hbm [shape: f32[128,128], index: 6, kind: input, shape index: {}]
  %s7 = inlined_call_operand.vmem [shape: f32[1,128], index: 7, kind: input, shape index: {}]
  %s8 = inlined_call_operand.vmem [shape: f32[32,128], index: 8, kind: input, shape index: {}]
  %s9 = inlined_call_operand.hbm [shape: f32[1,1], index: 9, kind: output, shape index: {}]
  %s10 = sld [smem:[#allocation0]]
  $region54: #{tpu_custom_call.1} parent=0
    _
  %s12 = ssub.s32 1, %s10
  %s13 = scalar_select 0, %s12, %s10
  $region1: #{tpu_custom_call.1} parent=0
    #allocation2 [shape = 'u8[65536]{0}', space=vmem, size = 0x10000, scoped, tag = 'input window, operand 4, single buffered']
    #allocation3 [shape = 's32[1]{0}', space=sflag, size = 0x4, scoped, tag = 'scoped memory for tpu_custom_call.1']
    #allocation4 [shape = 's32[1]{0}', space=sflag, size = 0x4, scoped, tag = 'scoped memory for tpu_custom_call.1']
    #allocation5 [shape = 'u8[65536]{0}', space=vmem, size = 0x10000, scoped, tag = 'input window, operand 6, single buffered']
    #allocation6 [shape = 's32[1]{0}', space=sflag, size = 0x4, scoped, tag = 'scoped memory for tpu_custom_call.1']
    #allocation7 [shape = 'u8[512]{0}', space=vmem, size = 0x400, scoped, tag = 'output window, operand 0, single buffered']
    %14 = vsyncpa [#allocation3], 0
    %15 = vsyncpa [#allocation6], 0
    %16 = vsyncpa [#allocation4], 0
    // Predicated region
    $region2: #{tpu_custom_call.1} parent=1 // pred_check
      _
    $region3: #{tpu_custom_call.1} parent=1 // pred_check_branch
      %18 = sbr.rel (0) target = $region5
    $region4: #{tpu_custom_call.1} parent=1 // pred_region
      _
    $region5: #{tpu_custom_call.1} parent=1 // pred_fallthru
      _
    // Predicated region
    $region6: #{tpu_custom_call.1} parent=1 // pred_check
      _
    $region7: #{tpu_custom_call.1} parent=1 // pred_check_branch
      %20 = sbr.rel (0) target = $region9
    $region8: #{tpu_custom_call.1} parent=1 // pred_region
      _
    $region9: #{tpu_custom_call.1} parent=1 // pred_fallthru
      _
    // Predicated region
    $region10: #{tpu_custom_call.1} parent=1 // pred_check
      _
    $region11: #{tpu_custom_call.1} parent=1 // pred_check_branch
      %22 = sbr.rel (0) target = $region13
    $region12: #{tpu_custom_call.1} parent=1 // pred_region
      _
    $region13: #{tpu_custom_call.1} parent=1 // pred_fallthru
      _
    // Predicated region
    $region14: #{tpu_custom_call.1} parent=1 // pred_check
      _
    $region15: #{tpu_custom_call.1} parent=1 // pred_check_branch
      %24 = sbr.rel (0) target = $region17
    $region16: #{tpu_custom_call.1} parent=1 // pred_region
      _
    $region17: #{tpu_custom_call.1} parent=1 // pred_fallthru
      _
    // Predicated region
    $region18: #{tpu_custom_call.1} parent=1 // pred_check
      _
    $region19: #{tpu_custom_call.1} parent=1 // pred_check_branch
      %26 = sbr.rel (0) target = $region21
    $region20: #{tpu_custom_call.1} parent=1 // pred_region
      %s28 = ssub.s32 2048, 2048
      %29 = vsyncadd [#allocation3], %s28
      %s30 = sshll.u32 [#allocation2], 4
      %s31 = int_to_ptr.vmem [resolvable:$true] %s30
      %36 = dma.hbm_to_vmem [thread:$0]  %s4, 2048, %s31, [#allocation3], 128, 128, 8
    $region21: #{tpu_custom_call.1} parent=1 // pred_fallthru
      _
    // Predicated region
    $region22: #{tpu_custom_call.1} parent=1 // pred_check
      _
    $region23: #{tpu_custom_call.1} parent=1 // pred_check_branch
      %38 = sbr.rel (0) target = $region25
    $region24: #{tpu_custom_call.1} parent=1 // pred_region
      _
    $region25: #{tpu_custom_call.1} parent=1 // pred_fallthru
      _
    // Predicated region
    $region26: #{tpu_custom_call.1} parent=1 // pred_check
      _
    $region27: #{tpu_custom_call.1} parent=1 // pred_check_branch
      %40 = sbr.rel (0) target = $region29
    $region28: #{tpu_custom_call.1} parent=1 // pred_region
      %s42 = ssub.s32 2048, 2048
      %43 = vsyncadd [#allocation6], %s42
      %s44 = sshll.u32 [#allocation5], 4
      %s45 = int_to_ptr.vmem [resolvable:$true] %s44
      %50 = dma.hbm_to_vmem [thread:$0]  %s6, 2048, %s45, [#allocation6], 128, 128, 8
    $region29: #{tpu_custom_call.1} parent=1 // pred_fallthru
      _
    // Predicated region
    $region30: #{tpu_custom_call.1} parent=1 // pred_check
      _
    $region31: #{tpu_custom_call.1} parent=1 // pred_check_branch
      %52 = sbr.rel (0) target = $region33
    $region32: #{tpu_custom_call.1} parent=1 // pred_region
      _
    $region33: #{tpu_custom_call.1} parent=1 // pred_fallthru
      _
    // Predicated region
    $region34: #{tpu_custom_call.1} parent=1 // pred_check
      _
    $region35: #{tpu_custom_call.1} parent=1 // pred_check_branch
      %54 = sbr.rel (0) target = $region37
    $region36: #{tpu_custom_call.1} parent=1 // pred_region
      _
    $region37: #{tpu_custom_call.1} parent=1 // pred_fallthru
      _
    // Predicated region
    $region38: #{tpu_custom_call.1} parent=1 // pred_check
      _
    $region39: #{tpu_custom_call.1} parent=1 // pred_check_branch
      %56 = sbr.rel (0) target = $region41
    $region40: #{tpu_custom_call.1} parent=1 // pred_region
      %57 = dma.done [#allocation3], 2048
    $region41: #{tpu_custom_call.1} parent=1 // pred_fallthru
      _
    // Predicated region
    $region42: #{tpu_custom_call.1} parent=1 // pred_check
      _
    $region43: #{tpu_custom_call.1} parent=1 // pred_check_branch
      %59 = sbr.rel (0) target = $region45
    $region44: #{tpu_custom_call.1} parent=1 // pred_region
      %60 = dma.done [#allocation6], 2048
    $region45: #{tpu_custom_call.1} parent=1 // pred_fallthru
      _
    %v61 = vld [vmem:[%s0] sm:$0xff]
    %v62 = vld [vmem:[%s0 + $0x8] sm:$0xff]
    %v63 = vld [vmem:[%s0 + $0x10] sm:$0xff]
    %v64 = vld [vmem:[%s0 + $0x18] sm:$0xff]
    %v65 = vld [vmem:[#allocation2] sm:$0xff]
    %v66 = vld [vmem:[#allocation2 + $0x8] sm:$0xff]
    %v67 = vld [vmem:[#allocation2 + $0x10] sm:$0xff]
    %v68 = vld [vmem:[#allocation2 + $0x18] sm:$0xff]
    %v69 = vld [vmem:[#allocation2 + $0x20] sm:$0xff]
    %v70 = vld [vmem:[#allocation2 + $0x28] sm:$0xff]
    %v71 = vld [vmem:[#allocation2 + $0x30] sm:$0xff]
    %v72 = vld [vmem:[#allocation2 + $0x38] sm:$0xff]
    %v73 = vld [vmem:[#allocation2 + $0x40] sm:$0xff]
    %v74 = vld [vmem:[#allocation2 + $0x48] sm:$0xff]
    %v75 = vld [vmem:[#allocation2 + $0x50] sm:$0xff]
    %v76 = vld [vmem:[#allocation2 + $0x58] sm:$0xff]
    %v77 = vld [vmem:[#allocation2 + $0x60] sm:$0xff]
    %v78 = vld [vmem:[#allocation2 + $0x68] sm:$0xff]
    %v79 = vld [vmem:[#allocation2 + $0x70] sm:$0xff]
    %v80 = vld [vmem:[#allocation2 + $0x78] sm:$0xff]
    %v81 = vld [vmem:[%s5] sm:$0x1]
    %v83 = vlaneseq
    %v84 = vshrl.u32 %v83, 7
    %v85 = vsub.s32 0, %v84
    %v86 = vrot.slane %v81, %v85
    %88 = vmatprep.subr.mxu0 0.0
    %89 = vmatpush1.msra.mxu0 %v80
    %90 = vmatprep.subr.mxu0 0.0
    %91 = vmatpush1.msra.mxu0 %v79
    %92 = vmatprep.subr.mxu0 0.0
    %93 = vmatpush1.msra.mxu0 %v78
    %94 = vmatprep.subr.mxu0 0.0
    %95 = vmatpush1.msra.mxu0 %v77
    %96 = vmatprep.subr.mxu0 0.0
    %97 = vmatpush1.msra.mxu0 %v76
    %98 = vmatprep.subr.mxu0 0.0
    %99 = vmatpush1.msra.mxu0 %v75
    %100 = vmatprep.subr.mxu0 0.0
    %101 = vmatpush1.msra.mxu0 %v74
    %102 = vmatprep.subr.mxu0 0.0
    %103 = vmatpush1.msra.mxu0 %v73
    %104 = vmatprep.subr.mxu0 0.0
    %105 = vmatpush1.msra.mxu0 %v72
    %106 = vmatprep.subr.mxu0 0.0
    %107 = vmatpush1.msra.mxu0 %v71
    %108 = vmatprep.subr.mxu0 0.0
    %109 = vmatpush1.msra.mxu0 %v70
    %110 = vmatprep.subr.mxu0 0.0
    %111 = vmatpush1.msra.mxu0 %v69
    %112 = vmatprep.subr.mxu0 0.0
    %113 = vmatpush1.msra.mxu0 %v68
    %114 = vmatprep.subr.mxu0 0.0
    %115 = vmatpush1.msra.mxu0 %v67
    %116 = vmatprep.subr.mxu0 0.0
    %117 = vmatpush1.msra.mxu0 %v66
    %118 = vmatprep.subr.mxu0 0.0
    %119 = vmatpush1.msra.mxu0 %v65
    %120 = vmatprep.subr.mxu0 0.0
    %121 = vmatpush2.msra.mxu0 0.0
    %122 = vmatprep.subr.mxu0 0.0
    %123 = vmatpush2.msra.mxu0 0.0
    %124 = vmatprep.subr.mxu0 0.0
    %125 = vmatpush2.msra.mxu0 0.0
    %126 = vmatprep.subr.mxu0 0.0
    %127 = vmatpush2.msra.mxu0 0.0
    %128 = vmatprep.subr.mxu0 0.0
    %129 = vmatpush2.msra.mxu0 0.0
    %130 = vmatprep.subr.mxu0 0.0
    %131 = vmatpush2.msra.mxu0 0.0
    %132 = vmatprep.subr.mxu0 0.0
    %133 = vmatpush2.msra.mxu0 0.0
    %134 = vmatprep.subr.mxu0 0.0
    %135 = vmatpush2.msra.mxu0 0.0
    %136 = vmatprep.subr.mxu0 0.0
    %137 = vmatpush2.msra.mxu0 0.0
    %138 = vmatprep.subr.mxu0 0.0
    %139 = vmatpush2.msra.mxu0 0.0
    %140 = vmatprep.subr.mxu0 0.0
    %141 = vmatpush2.msra.mxu0 0.0
    %142 = vmatprep.subr.mxu0 0.0
    %143 = vmatpush2.msra.mxu0 0.0
    %144 = vmatprep.subr.mxu0 0.0
    %145 = vmatpush2.msra.mxu0 0.0
    %146 = vmatprep.subr.mxu0 0.0
    %147 = vmatpush2.msra.mxu0 0.0
    %148 = vmatprep.subr.mxu0 0.0
    %149 = vmatpush2.msra.mxu0 0.0
    %150 = vmatprep.subr.mxu0 0.0
    %151 = vmatpush2.msra.mxu0 0.0
    %152 = vmatprep.mubr.f32.mxu0 0.0
    %153 = vmatmul.mubr.f32.gmra.mxu0 %v61
    %v154 = vpop.f32.mrf.mxu0
    %v155 = vadd.f32 %v86, %v154
    %v156 = vpop.f32.mrf.mxu0
    %157 = vmatprep.mubr.f32.mxu0 0.0
    %158 = vmatmul.mubr.f32.gmra.mxu0 %v62
    %v159 = vpop.f32.mrf.mxu0
    %v160 = vadd.f32 %v86, %v159
    %v161 = vpop.f32.mrf.mxu0
    %162 = vmatprep.mubr.f32.mxu0 0.0
    %163 = vmatmul.mubr.f32.gmra.mxu0 %v63
    %v164 = vpop.f32.mrf.mxu0
    %v165 = vadd.f32 %v86, %v164
    %v166 = vpop.f32.mrf.mxu0
    %167 = vmatprep.mubr.f32.mxu0 0.0
    %168 = vmatmul.mubr.f32.gmra.mxu0 %v64
    %v169 = vpop.f32.mrf.mxu0
    %v170 = vadd.f32 %v86, %v169
    %v171 = vpop.f32.mrf.mxu0
    %172 = vdwg.mxu0
    %v173 = vmax.f32 %v155, 0.0
    %v174 = vmax.f32 %v160, 0.0
    %v175 = vmax.f32 %v165, 0.0
    %v176 = vmax.f32 %v170, 0.0
    %v177 = vld [vmem:[#allocation5] sm:$0xff]
    %v178 = vld [vmem:[#allocation5 + $0x8] sm:$0xff]
    %v179 = vld [vmem:[#allocation5 + $0x10] sm:$0xff]
    %v180 = vld [vmem:[#allocation5 + $0x18] sm:$0xff]
    %v181 = vld [vmem:[#allocation5 + $0x20] sm:$0xff]
    %v182 = vld [vmem:[#allocation5 + $0x28] sm:$0xff]
    %v183 = vld [vmem:[#allocation5 + $0x30] sm:$0xff]
    %v184 = vld [vmem:[#allocation5 + $0x38] sm:$0xff]
    %v185 = vld [vmem:[#allocation5 + $0x40] sm:$0xff]
    %v186 = vld [vmem:[#allocation5 + $0x48] sm:$0xff]
    %v187 = vld [vmem:[#allocation5 + $0x50] sm:$0xff]
    %v188 = vld [vmem:[#allocation5 + $0x58] sm:$0xff]
    %v189 = vld [vmem:[#allocation5 + $0x60] sm:$0xff]
    %v190 = vld [vmem:[#allocation5 + $0x68] sm:$0xff]
    %v191 = vld [vmem:[#allocation5 + $0x70] sm:$0xff]
    %v192 = vld [vmem:[#allocation5 + $0x78] sm:$0xff]
    %v193 = vld [vmem:[%s7] sm:$0x1]
    %v195 = vlaneseq
    %v196 = vshrl.u32 %v195, 7
    %v197 = vsub.s32 0, %v196
    %v198 = vrot.slane %v193, %v197
    %200 = vmatprep.subr.mxu0 0.0
    %201 = vmatpush1.msra.mxu0 %v192
    %202 = vmatprep.subr.mxu0 0.0
    %203 = vmatpush1.msra.mxu0 %v191
    %204 = vmatprep.subr.mxu0 0.0
    %205 = vmatpush1.msra.mxu0 %v190
    %206 = vmatprep.subr.mxu0 0.0
    %207 = vmatpush1.msra.mxu0 %v189
    %208 = vmatprep.subr.mxu0 0.0
    %209 = vmatpush1.msra.mxu0 %v188
    %210 = vmatprep.subr.mxu0 0.0
    %211 = vmatpush1.msra.mxu0 %v187
    %212 = vmatprep.subr.mxu0 0.0
    %213 = vmatpush1.msra.mxu0 %v186
    %214 = vmatprep.subr.mxu0 0.0
    %215 = vmatpush1.msra.mxu0 %v185
    %216 = vmatprep.subr.mxu0 0.0
    %217 = vmatpush1.msra.mxu0 %v184
    %218 = vmatprep.subr.mxu0 0.0
    %219 = vmatpush1.msra.mxu0 %v183
    %220 = vmatprep.subr.mxu0 0.0
    %221 = vmatpush1.msra.mxu0 %v182
    %222 = vmatprep.subr.mxu0 0.0
    %223 = vmatpush1.msra.mxu0 %v181
    %224 = vmatprep.subr.mxu0 0.0
    %225 = vmatpush1.msra.mxu0 %v180
    %226 = vmatprep.subr.mxu0 0.0
    %227 = vmatpush1.msra.mxu0 %v179
    %228 = vmatprep.subr.mxu0 0.0
    %229 = vmatpush1.msra.mxu0 %v178
    %230 = vmatprep.subr.mxu0 0.0
    %231 = vmatpush1.msra.mxu0 %v177
    %232 = vmatprep.subr.mxu0 0.0
    %233 = vmatpush2.msra.mxu0 0.0
    %234 = vmatprep.subr.mxu0 0.0
    %235 = vmatpush2.msra.mxu0 0.0
    %236 = vmatprep.subr.mxu0 0.0
    %237 = vmatpush2.msra.mxu0 0.0
    %238 = vmatprep.subr.mxu0 0.0
    %239 = vmatpush2.msra.mxu0 0.0
    %240 = vmatprep.subr.mxu0 0.0
    %241 = vmatpush2.msra.mxu0 0.0
    %242 = vmatprep.subr.mxu0 0.0
    %243 = vmatpush2.msra.mxu0 0.0
    %244 = vmatprep.subr.mxu0 0.0
    %245 = vmatpush2.msra.mxu0 0.0
    %246 = vmatprep.subr.mxu0 0.0
    %247 = vmatpush2.msra.mxu0 0.0
    %248 = vmatprep.subr.mxu0 0.0
    %249 = vmatpush2.msra.mxu0 0.0
    %250 = vmatprep.subr.mxu0 0.0
    %251 = vmatpush2.msra.mxu0 0.0
    %252 = vmatprep.subr.mxu0 0.0
    %253 = vmatpush2.msra.mxu0 0.0
    %254 = vmatprep.subr.mxu0 0.0
    %255 = vmatpush2.msra.mxu0 0.0
    %256 = vmatprep.subr.mxu0 0.0
    %257 = vmatpush2.msra.mxu0 0.0
    %258 = vmatprep.subr.mxu0 0.0
    %259 = vmatpush2.msra.mxu0 0.0
    %260 = vmatprep.subr.mxu0 0.0
    %261 = vmatpush2.msra.mxu0 0.0
    %262 = vmatprep.subr.mxu0 0.0
    %263 = vmatpush2.msra.mxu0 0.0
    %264 = vmatprep.mubr.f32.mxu0 0.0
    %265 = vmatmul.mubr.f32.gmra.mxu0 %v173
    %v266 = vpop.f32.mrf.mxu0
    %v267 = vadd.f32 %v198, %v266
    %v268 = vpop.f32.mrf.mxu0
    %269 = vmatprep.mubr.f32.mxu0 0.0
    %270 = vmatmul.mubr.f32.gmra.mxu0 %v174
    %v271 = vpop.f32.mrf.mxu0
    %v272 = vadd.f32 %v198, %v271
    %v273 = vpop.f32.mrf.mxu0
    %274 = vmatprep.mubr.f32.mxu0 0.0
    %275 = vmatmul.mubr.f32.gmra.mxu0 %v175
    %v276 = vpop.f32.mrf.mxu0
    %v277 = vadd.f32 %v198, %v276
    %v278 = vpop.f32.mrf.mxu0
    %279 = vmatprep.mubr.f32.mxu0 0.0
    %280 = vmatmul.mubr.f32.gmra.mxu0 %v176
    %v281 = vpop.f32.mrf.mxu0
    %v282 = vadd.f32 %v198, %v281
    %v283 = vpop.f32.mrf.mxu0
    %284 = vdwg.mxu0
    %v285 = vlaneseq
    %v286 = vand.u32 %v285, 127
    %v287 = vld [vmem:[%s1] sm:$0xff]
    %v288 = vld [vmem:[%s1 + $0x8] sm:$0xff]
    %v289 = vld [vmem:[%s1 + $0x10] sm:$0xff]
    %v290 = vld [vmem:[%s1 + $0x18] sm:$0xff]
    %v291 = vld [vmem:[%s1 + $0x20] sm:$0xff]
    %v292 = vld [vmem:[%s1 + $0x28] sm:$0xff]
    %293 = vset.pattern.permute.xlu0 0
    %294 = vperm.xlu0 %293, %v287
    %v295 = vpop.permute.xlu0 %294
    %296 = vset.pattern.permute.xlu0 0
    %297 = vperm.xlu0 %296, %v288
    %v298 = vpop.permute.xlu0 %297
    %299 = vset.pattern.permute.xlu0 0
    %300 = vperm.xlu0 %299, %v289
    %v301 = vpop.permute.xlu0 %300
    %302 = vset.pattern.permute.xlu0 0
    %303 = vperm.xlu0 %302, %v290
    %v304 = vpop.permute.xlu0 %303
    %305 = vset.pattern.permute.xlu0 0
    %306 = vperm.xlu0 %305, %v291
    %v307 = vpop.permute.xlu0 %306
    %308 = vset.pattern.permute.xlu0 0
    %309 = vperm.xlu0 %308, %v292
    %v310 = vpop.permute.xlu0 %309
    %vm311 = vcmp.eq.s32.totalorder %v286, %v295
    %vm312 = vcmp.eq.s32.totalorder %v286, %v298
    %vm313 = vcmp.eq.s32.totalorder %v286, %v301
    %vm314 = vcmp.eq.s32.totalorder %v286, %v304
    %vm315 = vcmp.eq.s32.totalorder %v286, %v307
    %vm316 = vcmp.eq.s32.totalorder %v286, %v310
    %v317 = vsel %vm311, 1, 0
    %v318 = vsel %vm312, 1, 0
    %v319 = vsel %vm313, 1, 0
    %v320 = vsel %vm314, 1, 0
    %v321 = vsel %vm315, 1, 0
    %v322 = vsel %vm316, 1, 0
    %v323 = vcvt.s32.f32 %v317
    %v324 = vcvt.s32.f32 %v318
    %v325 = vcvt.s32.f32 %v319
    %v326 = vcvt.s32.f32 %v320
    %v327 = vcvt.s32.f32 %v321
    %v328 = vcvt.s32.f32 %v322
    %vm329 = vcmask 261120
    %v331 = vsel %vm329, %v323, 0
    %v334 = vsel %vm329, %v324, 0
    %v337 = vsel %vm329, %v325, 0
    %v340 = vsel %vm329, %v326, 0
    %v343 = vsel %vm329, %v327, 0
    %v346 = vsel %vm329, %v328, 0
    %348 = vmatprep.subr.mxu0 0.0
    %349 = vmatpush1.msra.mxu0 0.0
    %350 = vmatprep.subr.mxu0 0.0
    %351 = vmatpush1.msra.mxu0 0.0
    %352 = vmatprep.subr.mxu0 0.0
    %353 = vmatpush1.msra.mxu0 0.0
    %354 = vmatprep.subr.mxu0 0.0
    %355 = vmatpush1.msra.mxu0 0.0
    %356 = vmatprep.subr.mxu0 0.0
    %357 = vmatpush1.msra.mxu0 0.0
    %358 = vmatprep.subr.mxu0 0.0
    %359 = vmatpush1.msra.mxu0 0.0
    %360 = vmatprep.subr.mxu0 0.0
    %361 = vmatpush1.msra.mxu0 0.0
    %362 = vmatprep.subr.mxu0 0.0
    %363 = vmatpush1.msra.mxu0 0.0
    %364 = vmatprep.subr.mxu0 0.0
    %365 = vmatpush1.msra.mxu0 0.0
    %366 = vmatprep.subr.mxu0 0.0
    %367 = vmatpush1.msra.mxu0 0.0
    %368 = vmatprep.subr.mxu0 0.0
    %369 = vmatpush1.msra.mxu0 0.0
    %370 = vmatprep.subr.mxu0 0.0
    %371 = vmatpush1.msra.mxu0 0.0
    %372 = vmatprep.subr.mxu0 0.0
    %373 = vmatpush1.msra.mxu0 %v282
    %374 = vmatprep.subr.mxu0 0.0
    %375 = vmatpush1.msra.mxu0 %v277
    %376 = vmatprep.subr.mxu0 0.0
    %377 = vmatpush1.msra.mxu0 %v272
    %378 = vmatprep.subr.mxu0 0.0
    %379 = vmatpush1.msra.mxu0 %v267
    %380 = vmatprep.subr.mxu0 0.0
    %381 = vmatpush2.msra.mxu0 0.0
    %382 = vmatprep.subr.mxu0 0.0
    %383 = vmatpush2.msra.mxu0 0.0
    %384 = vmatprep.subr.mxu0 0.0
    %385 = vmatpush2.msra.mxu0 0.0
    %386 = vmatprep.subr.mxu0 0.0
    %387 = vmatpush2.msra.mxu0 0.0
    %388 = vmatprep.subr.mxu0 0.0
    %389 = vmatpush2.msra.mxu0 0.0
    %390 = vmatprep.subr.mxu0 0.0
    %391 = vmatpush2.msra.mxu0 0.0
    %392 = vmatprep.subr.mxu0 0.0
    %393 = vmatpush2.msra.mxu0 0.0
    %394 = vmatprep.subr.mxu0 0.0
    %395 = vmatpush2.msra.mxu0 0.0
    %396 = vmatprep.subr.mxu0 0.0
    %397 = vmatpush2.msra.mxu0 0.0
    %398 = vmatprep.subr.mxu0 0.0
    %399 = vmatpush2.msra.mxu0 0.0
    %400 = vmatprep.subr.mxu0 0.0
    %401 = vmatpush2.msra.mxu0 0.0
    %402 = vmatprep.subr.mxu0 0.0
    %403 = vmatpush2.msra.mxu0 0.0
    %404 = vmatprep.subr.mxu0 0.0
    %405 = vmatpush2.msra.mxu0 0.0
    %406 = vmatprep.subr.mxu0 0.0
    %407 = vmatpush2.msra.mxu0 0.0
    %408 = vmatprep.subr.mxu0 0.0
    %409 = vmatpush2.msra.mxu0 0.0
    %410 = vmatprep.subr.mxu0 0.0
    %411 = vmatpush2.msra.mxu0 0.0
    %412 = vmatprep.mubr.f32.mxu0 0.0
    %413 = vmatmul.mubr.f32.gmra.mxu0 %v331
    %v414 = vpop.f32.mrf.mxu0
    %v415 = vadd.f32 0.0, %v414
    %v416 = vpop.f32.mrf.mxu0
    %417 = vmatprep.mubr.f32.mxu0 0.0
    %418 = vmatmul.mubr.f32.gmra.mxu0 %v334
    %v419 = vpop.f32.mrf.mxu0
    %v420 = vadd.f32 0.0, %v419
    %v421 = vpop.f32.mrf.mxu0
    %422 = vmatprep.mubr.f32.mxu0 0.0
    %423 = vmatmul.mubr.f32.gmra.mxu0 %v337
    %v424 = vpop.f32.mrf.mxu0
    %v425 = vadd.f32 0.0, %v424
    %v426 = vpop.f32.mrf.mxu0
    %427 = vmatprep.mubr.f32.mxu0 0.0
    %428 = vmatmul.mubr.f32.gmra.mxu0 %v340
    %v429 = vpop.f32.mrf.mxu0
    %v430 = vadd.f32 0.0, %v429
    %v431 = vpop.f32.mrf.mxu0
    %432 = vmatprep.mubr.f32.mxu0 0.0
    %433 = vmatmul.mubr.f32.gmra.mxu0 %v343
    %v434 = vpop.f32.mrf.mxu0
    %v435 = vadd.f32 0.0, %v434
    %v436 = vpop.f32.mrf.mxu0
    %437 = vmatprep.mubr.f32.mxu0 0.0
    %438 = vmatmul.mubr.f32.gmra.mxu0 %v346
    %v439 = vpop.f32.mrf.mxu0
    %v440 = vadd.f32 0.0, %v439
    %v441 = vpop.f32.mrf.mxu0
    %442 = vdwg.mxu0
    %v443 = vld [vmem:[%s2] sm:$0xff]
    %v444 = vld [vmem:[%s2 + $0x8] sm:$0xff]
    %445 = vset.pattern.permute.xlu0 0
    %446 = vperm.xlu0 %445, %v443
    %v447 = vpop.permute.xlu0 %446
    %448 = vset.pattern.permute.xlu0 0
    %449 = vperm.xlu0 %448, %v444
    %v450 = vpop.permute.xlu0 %449
    %vm451 = vcmp.eq.s32.totalorder %v286, %v447
    %vm452 = vcmp.eq.s32.totalorder %v286, %v450
    %v453 = vsel %vm451, 1, 0
    %v454 = vsel %vm452, 1, 0
    %v455 = vcvt.s32.f32 %v453
    %v456 = vcvt.s32.f32 %v454
    %v457 = vld [vmem:[%s8] sm:$0xff]
    %v458 = vld [vmem:[%s8 + $0x8] sm:$0xff]
    %v459 = vld [vmem:[%s8 + $0x10] sm:$0xff]
    %v460 = vld [vmem:[%s8 + $0x18] sm:$0xff]
    %v462 = vsel %vm329, %v455, 0
    %v465 = vsel %vm329, %v456, 0
    %467 = vmatprep.subr.mxu0 0.0
    %468 = vmatpush1.msra.mxu0 0.0
    %469 = vmatprep.subr.mxu0 0.0
    %470 = vmatpush1.msra.mxu0 0.0
    %471 = vmatprep.subr.mxu0 0.0
    %472 = vmatpush1.msra.mxu0 0.0
    %473 = vmatprep.subr.mxu0 0.0
    %474 = vmatpush1.msra.mxu0 0.0
    %475 = vmatprep.subr.mxu0 0.0
    %476 = vmatpush1.msra.mxu0 0.0
    %477 = vmatprep.subr.mxu0 0.0
    %478 = vmatpush1.msra.mxu0 0.0
    %479 = vmatprep.subr.mxu0 0.0
    %480 = vmatpush1.msra.mxu0 0.0
    %481 = vmatprep.subr.mxu0 0.0
    %482 = vmatpush1.msra.mxu0 0.0
    %483 = vmatprep.subr.mxu0 0.0
    %484 = vmatpush1.msra.mxu0 0.0
    %485 = vmatprep.subr.mxu0 0.0
    %486 = vmatpush1.msra.mxu0 0.0
    %487 = vmatprep.subr.mxu0 0.0
    %488 = vmatpush1.msra.mxu0 0.0
    %489 = vmatprep.subr.mxu0 0.0
    %490 = vmatpush1.msra.mxu0 0.0
    %491 = vmatprep.subr.mxu0 0.0
    %492 = vmatpush1.msra.mxu0 %v460
    %493 = vmatprep.subr.mxu0 0.0
    %494 = vmatpush1.msra.mxu0 %v459
    %495 = vmatprep.subr.mxu0 0.0
    %496 = vmatpush1.msra.mxu0 %v458
    %497 = vmatprep.subr.mxu0 0.0
    %498 = vmatpush1.msra.mxu0 %v457
    %499 = vmatprep.subr.mxu0 0.0
    %500 = vmatpush2.msra.mxu0 0.0
    %501 = vmatprep.subr.mxu0 0.0
    %502 = vmatpush2.msra.mxu0 0.0
    %503 = vmatprep.subr.mxu0 0.0
    %504 = vmatpush2.msra.mxu0 0.0
    %505 = vmatprep.subr.mxu0 0.0
    %506 = vmatpush2.msra.mxu0 0.0
    %507 = vmatprep.subr.mxu0 0.0
    %508 = vmatpush2.msra.mxu0 0.0
    %509 = vmatprep.subr.mxu0 0.0
    %510 = vmatpush2.msra.mxu0 0.0
    %511 = vmatprep.subr.mxu0 0.0
    %512 = vmatpush2.msra.mxu0 0.0
    %513 = vmatprep.subr.mxu0 0.0
    %514 = vmatpush2.msra.mxu0 0.0
    %515 = vmatprep.subr.mxu0 0.0
    %516 = vmatpush2.msra.mxu0 0.0
    %517 = vmatprep.subr.mxu0 0.0
    %518 = vmatpush2.msra.mxu0 0.0
    %519 = vmatprep.subr.mxu0 0.0
    %520 = vmatpush2.msra.mxu0 0.0
    %521 = vmatprep.subr.mxu0 0.0
    %522 = vmatpush2.msra.mxu0 0.0
    %523 = vmatprep.subr.mxu0 0.0
    %524 = vmatpush2.msra.mxu0 0.0
    %525 = vmatprep.subr.mxu0 0.0
    %526 = vmatpush2.msra.mxu0 0.0
    %527 = vmatprep.subr.mxu0 0.0
    %528 = vmatpush2.msra.mxu0 0.0
    %529 = vmatprep.subr.mxu0 0.0
    %530 = vmatpush2.msra.mxu0 0.0
    %531 = vmatprep.mubr.f32.mxu0 0.0
    %532 = vmatmul.mubr.f32.gmra.mxu0 %v462
    %v533 = vpop.f32.mrf.mxu0
    %v534 = vadd.f32 0.0, %v533
    %v535 = vpop.f32.mrf.mxu0
    %536 = vmatprep.mubr.f32.mxu0 0.0
    %537 = vmatmul.mubr.f32.gmra.mxu0 %v465
    %v538 = vpop.f32.mrf.mxu0
    %v539 = vadd.f32 0.0, %v538
    %v540 = vpop.f32.mrf.mxu0
    %541 = vdwg.mxu0
    %v542 = vadd.f32 %v415, %v534
    %v543 = vadd.f32 %v420, %v539
    %v544 = vsub.f32 %v542, %v425
    %v545 = vsub.f32 %v543, %v430
    %v546 = vand.u32 2147483647, %v544
    %v547 = vand.u32 2147483647, %v545
    %548 = vadd.xlane.f32.xlu0 %v546
    %v549 = vpop.xlane.xlu0 %548
    %550 = vadd.xlane.f32.xlu0 %v547
    %v551 = vpop.xlane.xlu0 %550
    %v552 = vsub.f32 0.0, %v549
    %v553 = vsub.f32 0.0, %v551
    %v554 = vsub.f32 %v542, %v435
    %v555 = vsub.f32 %v543, %v440
    %v556 = vand.u32 2147483647, %v554
    %v557 = vand.u32 2147483647, %v555
    %558 = vadd.xlane.f32.xlu0 %v556
    %v559 = vpop.xlane.xlu0 %558
    %560 = vadd.xlane.f32.xlu0 %v557
    %v561 = vpop.xlane.xlu0 %560
    %v562 = vsub.f32 0.0, %v559
    %v563 = vsub.f32 0.0, %v561
    %v564 = vadd.f32 %v562, 1.0
    %v565 = vadd.f32 %v563, 1.0
    %v566 = vsub.f32 %v564, %v552
    %v567 = vsub.f32 %v565, %v553
    %v568 = vmax.f32 %v566, 0.0
    %v569 = vmax.f32 %v567, 0.0
    %v570 = vld [vmem:[%s3] sm:$0xff]
    %v571 = vld [vmem:[%s3 + $0x8] sm:$0xff]
    %v572 = vmul.f32 %v568, %v570
    %v573 = vmul.f32 %v569, %v571
    %vm574 = vcmask 7168
    %v575 = vsel %vm574, %v572, 0.0
    %v576 = vsel %vm574, %v573, 0.0
    %v577 = vadd.f32 %v575, %v576
    %578 = vadd.xlane.f32.xlu0 %v577
    %v579 = vpop.xlane.xlu0 %578
    %v580 = vrot.slane %v579, 4
    %v581 = vadd.f32 %v579, %v580
    %v582 = vrot.slane %v581, 2
    %v583 = vadd.f32 %v581, %v582
    %v584 = vrot.slane %v583, 1
    %v585 = vadd.f32 %v583, %v584
    %s586 = vtos %v585
    %v587 = vstv %s586
    %v588 = vsel %vm574, %v570, 0.0
    %v589 = vsel %vm574, %v571, 0.0
    %v590 = vadd.f32 %v588, %v589
    %591 = vadd.xlane.f32.xlu0 %v590
    %v592 = vpop.xlane.xlu0 %591
    %v593 = vrot.slane %v592, 4
    %v594 = vadd.f32 %v592, %v593
    %v595 = vrot.slane %v594, 2
    %v596 = vadd.f32 %v594, %v595
    %v597 = vrot.slane %v596, 1
    %v598 = vadd.f32 %v596, %v597
    %s599 = vtos %v598
    %v600 = vstv %s599
    %v601 = vmax.f32 %v600, 1.0
    %v602 = vrcp.pop %v601
    %v603 = vmul.f32 %v587, %v602
    %vm604 = vcmask 0
    %605 = vst.msk [vmem:[#allocation7] sm:$0x1] %vm604, %v603
    // Predicated region
    $region46: #{tpu_custom_call.1} parent=1 // pred_check
      _
    $region47: #{tpu_custom_call.1} parent=1 // pred_check_branch
      %607 = sbr.rel (0) target = $region49
    $region48: #{tpu_custom_call.1} parent=1 // pred_region
      %s609 = ssub.s32 16, 16
      %610 = vsyncadd [#allocation4], %s609
      %s612 = sshll.u32 [#allocation7], 4
      %s613 = int_to_ptr.vmem [resolvable:$true] %s612
      %615 = dma.vmem_to_hbm [thread:$0]  %s613, 16, %s9, [#allocation4]
    $region49: #{tpu_custom_call.1} parent=1 // pred_fallthru
      _
    // Predicated region
    $region50: #{tpu_custom_call.1} parent=1 // pred_check
      _
    $region51: #{tpu_custom_call.1} parent=1 // pred_check_branch
      %617 = sbr.rel (0) target = $region53
    $region52: #{tpu_custom_call.1} parent=1 // pred_region
      %618 = dma.done [#allocation4], 16
    $region53: #{tpu_custom_call.1} parent=1 // pred_fallthru
      _
    %619 = vsyncpa [#allocation3], 1
    %620 = vsyncpa [#allocation6], 1
    %621 = vsyncpa [#allocation4], 1

</llo_original>
